<compile_context>
chip_gen: v6e
topology: v6e:2x2x1
jax: 0.10.0
libtpu: 0.0.40
codegen_flags: <defaults>
</compile_context>

<pallas_src>
import functools
import math

import numpy as np

import jax
import jax.numpy as jnp
from jax.experimental import pallas as pl
from jax.experimental.pallas import tpu as pltpu


# ----------------------------------------------------------------------------
# Constant construction (numpy float64, cached) — DFT bases + mel filterbank
# ----------------------------------------------------------------------------

def _round_up(x, m):
    return (x + m - 1) // m * m


def _hz_to_mel_slaney(freq):
    freq = np.asarray(freq, dtype=np.float64)
    f_sp = 200.0 / 3.0
    min_log_hz = 1000.0
    min_log_mel = min_log_hz / f_sp
    logstep = math.log(6.4) / 27.0
    return np.where(
        freq >= min_log_hz,
        min_log_mel + np.log(np.maximum(freq, min_log_hz) / min_log_hz) / logstep,
        freq / f_sp,
    )


def _mel_to_hz_slaney(mels):
    mels = np.asarray(mels, dtype=np.float64)
    f_sp = 200.0 / 3.0
    min_log_hz = 1000.0
    min_log_mel = min_log_hz / f_sp
    logstep = math.log(6.4) / 27.0
    return np.where(
        mels >= min_log_mel,
        min_log_hz * np.exp(logstep * (mels - min_log_mel)),
        f_sp * mels,
    )


def _melscale_fbanks_slaney(n_freqs, f_min, f_max, n_mels, sample_rate):
    """numpy port of torchaudio.functional.melscale_fbanks(norm='slaney', mel_scale='slaney')."""
    all_freqs = np.linspace(0.0, sample_rate // 2, n_freqs)
    m_min = float(_hz_to_mel_slaney(f_min))
    m_max = float(_hz_to_mel_slaney(f_max))
    m_pts = np.linspace(m_min, m_max, n_mels + 2)
    f_pts = _mel_to_hz_slaney(m_pts)
    f_diff = f_pts[1:] - f_pts[:-1]                      # (n_mels + 1,)
    slopes = f_pts[None, :] - all_freqs[:, None]         # (n_freqs, n_mels + 2)
    down = -slopes[:, :-2] / f_diff[:-1]
    up = slopes[:, 2:] / f_diff[1:]
    fb = np.maximum(0.0, np.minimum(down, up))           # (n_freqs, n_mels)
    enorm = 2.0 / (f_pts[2:n_mels + 2] - f_pts[:n_mels])  # slaney norm
    return fb * enorm[None, :]


def _split_bf16(a_f32):
    """hi/lo bf16 decomposition: a ≈ hi + lo with ~2^-18 relative residual."""
    a = jnp.asarray(a_f32, jnp.float32)
    hi = a.astype(jnp.bfloat16)
    lo = (a - hi.astype(jnp.float32)).astype(jnp.bfloat16)
    return hi, lo


@functools.lru_cache(maxsize=None)
def _make_constants(sample_rate, n_fft, win_length, n_mels, f_min, f_max):
    n_freq = n_fft // 2 + 1
    fb = _melscale_fbanks_slaney(n_freq, f_min, f_max, n_mels, sample_rate)

    # Drop trailing (near-)zero frequency rows of fb — they contribute nothing
    # to the fused mel output. At f_max == sr/2 this drops the Nyquist bin and
    # shrinks f_pad from round_up(n_fft//2 + 1, 128) to n_fft//2.
    row_mag = np.max(np.abs(fb), axis=1)
    tol = row_mag.max() * 1e-10 if row_mag.max() > 0 else 0.0
    nz = np.nonzero(row_mag > tol)[0]
    n_keep = int(nz[-1]) + 1 if nz.size else 1

    f_pad = _round_up(n_keep, 128)          # lane-aligned re/im width
    n_mels_pad = _round_up(n_mels, 128)     # lane-dense output width

    # Periodic hann window of length win_length, zero-padded centered to n_fft
    # (exactly what torch.stft does when win_length < n_fft).
    win = 0.5 * (1.0 - np.cos(2.0 * np.pi * np.arange(win_length) / win_length))
    window = np.zeros(n_fft, np.float64)
    lpad = (n_fft - win_length) // 2
    window[lpad:lpad + win_length] = win

    # Windowed DFT bases (separate cos / sin so the kernel needs no slicing).
    # Exact modular phase in int64 -> float64 keeps cos/sin accurate at
    # n_fft=2048 where n*k overflows f32 precision.
    n = np.arange(n_fft, dtype=np.int64)
    k = np.arange(n_keep, dtype=np.int64)
    phase = 2.0 * np.pi * ((n[:, None] * k[None, :]) % n_fft).astype(np.float64) / n_fft
    cos_b = np.zeros((n_fft, f_pad), np.float32)
    sin_b = np.zeros((n_fft, f_pad), np.float32)
    cos_b[:, :n_keep] = (window[:, None] * np.cos(phase)).astype(np.float32)
    sin_b[:, :n_keep] = (-window[:, None] * np.sin(phase)).astype(np.float32)

    cos_hi, cos_lo = _split_bf16(cos_b)
    sin_hi, sin_lo = _split_bf16(sin_b)

    fb_pad = np.zeros((f_pad, n_mels_pad), np.float32)
    fb_pad[:n_keep, :n_mels] = fb[:n_keep].astype(np.float32)

    return (cos_hi, cos_lo, sin_hi, sin_lo, jnp.asarray(fb_pad),
            jnp.asarray(fb.astype(np.float32)), jnp.asarray(window.astype(np.float32)))


# ----------------------------------------------------------------------------
# Pallas kernel
# ----------------------------------------------------------------------------

def _logmel_kernel(x_ref, ch_ref, cl_ref, sh_ref, sl_ref, fb_ref, o_ref):
    """One tile of frames -> log-mel via bf16x3 DFT matmuls.

    x_ref:  (tm, n_fft)           frames (f32)
    ch/cl:  (n_fft, f_pad)        w*cos  hi/lo bf16 (resident VMEM)
    sh/sl:  (n_fft, f_pad)        -w*sin hi/lo bf16 (resident VMEM)
    fb_ref: (f_pad, n_mels_pad)   mel filterbank f32 (resident VMEM)
    o_ref:  (tm, n_mels_pad)      log(max(mel, 1e-5))
    """
    x = x_ref[...]
    x_hi = x.astype(jnp.bfloat16)
    x_lo = (x - x_hi.astype(jnp.float32)).astype(jnp.bfloat16)

    def dot(a, b):
        return jnp.dot(a, b, preferred_element_type=jnp.float32)

    ch = ch_ref[...]
    sh = sh_ref[...]
    # bf16x3: drop only the (x_lo @ B_lo) term.
    re = dot(x_hi, ch) + dot(x_lo, ch) + dot(x_hi, cl_ref[...])
    im = dot(x_hi, sh) + dot(x_lo, sh) + dot(x_hi, sl_ref[...])
    mag = jnp.sqrt(re * re + im * im + 1e-6)
    mel = jnp.dot(mag, fb_ref[...], preferred_element_type=jnp.float32)
    o_ref[...] = jnp.log(jnp.maximum(mel, 1e-5))


@functools.partial(jax.jit, static_argnames=("n_fft", "win_length", "hop_length", "n_mels"))
def _forward(y, cos_hi, cos_lo, sin_hi, sin_lo, fb_pad, *,
             n_fft, win_length, hop_length, n_mels):
    if y.ndim == 3:
        y = jnp.squeeze(y, axis=1)
    y = y.astype(jnp.float32)

    # Reflect padding, same as the torch module.
    pad_l = (win_length - hop_length) // 2
    pad_r = (win_length - hop_length + 1) // 2
    y = jnp.pad(y, ((0, 0), (pad_l, pad_r)), mode="reflect")

    B, L = y.shape
    T = 1 + (L - n_fft) // hop_length  # torch.stft, center=False

    # Frame extraction (plain XLA gather).
    # TODO(synk): move framing into the kernel (pl.ANY + manual DMA) to avoid
    # the n_fft/hop_length HBM expansion of this gather (biggest remaining cost
    # on v5e after the bf16x3 matmul change).
    idx = jnp.arange(T)[:, None] * hop_length + jnp.arange(n_fft)[None, :]
    frames = y[:, idx].reshape(B * T, n_fft)

    f_pad = cos_hi.shape[1]
    n_mels_pad = fb_pad.shape[1]

    rows = B * T
    # tm: target 512 (2x the 256-wide MXU M dim, amortizes per-step overhead
    # and resident-RHS reloads). For short inputs shrink tm so the parallel
    # grid has >= 2 steps and both v7x TensorCores get work.
    if rows <= 8:
        tm = 8
    else:
        tm = min(512, _round_up((rows + 1) // 2, 8))
    rows_pad = _round_up(rows, tm)
    if rows_pad != rows:
        frames = jnp.pad(frames, ((0, rows_pad - rows), (0, 0)))

    # VMEM budget: resident bf16 bases + f32 fb (single-buffered), double-
    # buffered frame/out tiles, in-kernel intermediates, plus headroom for
    # Mosaic internal scratch. Capped at 56 MiB (< v7x's 64 MiB physical VMEM).
    bytes_const = 4 * n_fft * f_pad * 2 + f_pad * n_mels_pad * 4
    bytes_io = 2 * tm * n_fft * 4 + 2 * tm * n_mels_pad * 4
    bytes_interm = (2 * tm * n_fft * 2          # x_hi, x_lo (bf16)
                    + 3 * tm * f_pad * 4        # re, im, mag
                    + tm * n_mels_pad * 4)      # mel
    vmem_limit = bytes_const + bytes_io + bytes_interm + (8 << 20)
    vmem_limit = int(max(32 << 20, min(vmem_limit, 56 << 20)))

    grid = (rows_pad // tm,)
    out = pl.pallas_call(
        _logmel_kernel,
        out_shape=jax.ShapeDtypeStruct((rows_pad, n_mels_pad), jnp.float32),
        grid_spec=pltpu.PrefetchScalarGridSpec(
            num_scalar_prefetch=0,
            grid=grid,
            in_specs=[
                pl.BlockSpec((tm, n_fft), lambda i: (i, 0)),
                # Grid-invariant constants: whole-array VMEM residents
                # (single-buffered, no per-step re-DMA).
                pl.BlockSpec(memory_space=pltpu.MemorySpace.VMEM),
                pl.BlockSpec(memory_space=pltpu.MemorySpace.VMEM),
                pl.BlockSpec(memory_space=pltpu.MemorySpace.VMEM),
                pl.BlockSpec(memory_space=pltpu.MemorySpace.VMEM),
                pl.BlockSpec(memory_space=pltpu.MemorySpace.VMEM),
            ],
            out_specs=pl.BlockSpec((tm, n_mels_pad), lambda i: (i, 0)),
        ),
        compiler_params=pltpu.CompilerParams(
            dimension_semantics=("parallel",),
            vmem_limit_bytes=vmem_limit,
        ),
    )(frames, cos_hi, cos_lo, sin_hi, sin_lo, fb_pad)

    out = out[:rows, :n_mels].reshape(B, T, n_mels)
    return jnp.transpose(out, (0, 2, 1))  # (B, n_mels, T)


def log_mel_spectrogram(y, *, sample_rate=44100, n_fft=2048, win_length=2048,
                        hop_length=512, n_mels=128, f_min=0.0, f_max=None):
    """JAX/Pallas equivalent of LogMelSpectrogram.forward (return_linear=False)."""
    if win_length > n_fft:
        raise ValueError("win_length must be <= n_fft")
    if hop_length > win_length:
        raise ValueError("hop_length must be <= win_length")
    f_max = float(f_max) if f_max is not None else float(sample_rate // 2)
    cos_hi, cos_lo, sin_hi, sin_lo, fb_pad, _, _ = _make_constants(
        sample_rate, n_fft, win_length, n_mels, float(f_min), f_max)
    return _forward(y, cos_hi, cos_lo, sin_hi, sin_lo, fb_pad,
                    n_fft=n_fft, win_length=win_length,
                    hop_length=hop_length, n_mels=n_mels)


# ----------------------------------------------------------------------------
# Pure-JAX reference (rfft path) mirroring the torch module
# ----------------------------------------------------------------------------

def _reference_logmel(y, *, sample_rate=44100, n_fft=2048, win_length=2048,
                      hop_length=512, n_mels=128, f_min=0.0, f_max=None):
    f_max = float(f_max) if f_max is not None else float(sample_rate // 2)
    _, _, _, _, _, fb, window = _make_constants(
        sample_rate, n_fft, win_length, n_mels, float(f_min), f_max)
    if y.ndim == 3:
        y = jnp.squeeze(y, axis=1)
    y = y.astype(jnp.float32)
    pad_l = (win_length - hop_length) // 2
    pad_r = (win_length - hop_length + 1) // 2
    y = jnp.pad(y, ((0, 0), (pad_l, pad_r)), mode="reflect")
    B, L = y.shape
    T = 1 + (L - n_fft) // hop_length
    idx = jnp.arange(T)[:, None] * hop_length + jnp.arange(n_fft)[None, :]
    frames = y[:, idx] * window[None, None, :]
    spec = jnp.fft.rfft(frames, n=n_fft, axis=-1)                        # (B, T, n_freq)
    mag = jnp.sqrt(jnp.real(spec) ** 2 + jnp.imag(spec) ** 2 + 1e-6)
    mel = jnp.einsum("btf,fm->btm", mag, fb,
                     precision=jax.lax.Precision.HIGHEST)                # (B, T, n_mels)
    logmel = jnp.log(jnp.maximum(mel, 1e-5))
    return jnp.transpose(logmel, (0, 2, 1))                              # (B, n_mels, T)


# ----------------------------------------------------------------------------
# Test
# ----------------------------------------------------------------------------

if __name__ == "__main__":
    key = jax.random.PRNGKey(0)
    B, N = 2, 512
    y = jax.random.normal(key, (B, 1, N), dtype=jnp.float32)  # (B, 1, N) like torch

    configs = [
        # TPU-friendly shrink of the module defaults (2048/2048/512, 128 mels).
        dict(sample_rate=44100, n_fft=256, win_length=256, hop_length=64, n_mels=32),
        # win_length < n_fft exercises the centered zero-padded-window path.
        dict(sample_rate=44100, n_fft=256, win_length=192, hop_length=64, n_mels=32),
    ]

    for cfg in configs:
        out = jax.block_until_ready(log_mel_spectrogram(y, **cfg))
        ref = _reference_logmel(y, **cfg)
        assert out.shape == ref.shape, (out.shape, ref.shape)
        err = float(jnp.max(jnp.abs(out - ref)))
        assert err < 1e-3, err

    print("KERNEL_OK")
</pallas_src>

<mosaic_0001>
module attributes {stable_mosaic.version = 11 : i64} {
  func.func @_logmel_kernel(%arg0: i32, %arg1: memref<8x256xf32, #tpu.memory_space<vmem>>, %arg2: memref<256x128xbf16, #tpu.memory_space<vmem>>, %arg3: memref<256x128xbf16, #tpu.memory_space<vmem>>, %arg4: memref<256x128xbf16, #tpu.memory_space<vmem>>, %arg5: memref<256x128xbf16, #tpu.memory_space<vmem>>, %arg6: memref<128x128xf32, #tpu.memory_space<vmem>>, %arg7: memref<8x128xf32, #tpu.memory_space<vmem>>) attributes {dimension_semantics = [#tpu.dimension_semantics<parallel>], iteration_bounds = array<i64: 2>, scalar_prefetch = 0 : i64, scratch_operands = 0 : i64, tpu.core_type = #tpu.core_type<tc>, window_params = [{transform_indices = @transform_0, window_bounds = array<i64: 8, 256>}, {pipeline_mode = #tpu.pipeline_mode<synchronous>, transform_indices = @transform_1, window_bounds = array<i64: 256, 128>}, {pipeline_mode = #tpu.pipeline_mode<synchronous>, transform_indices = @transform_2, window_bounds = array<i64: 256, 128>}, {pipeline_mode = #tpu.pipeline_mode<synchronous>, transform_indices = @transform_3, window_bounds = array<i64: 256, 128>}, {pipeline_mode = #tpu.pipeline_mode<synchronous>, transform_indices = @transform_4, window_bounds = array<i64: 256, 128>}, {pipeline_mode = #tpu.pipeline_mode<synchronous>, transform_indices = @transform_5, window_bounds = array<i64: 128, 128>}, {transform_indices = @transform_6, window_bounds = array<i64: 8, 128>}]} {
    %c0 = arith.constant 0 : index
    %c0_0 = arith.constant 0 : index
    %0 = vector.load %arg1[%c0, %c0_0] : memref<8x256xf32, #tpu.memory_space<vmem>>, vector<8x256xf32>
    %1 = arith.truncf %0 : vector<8x256xf32> to vector<8x256xbf16>
    %2 = arith.extf %1 : vector<8x256xbf16> to vector<8x256xf32>
    %3 = arith.subf %0, %2 : vector<8x256xf32>
    %4 = arith.truncf %3 : vector<8x256xf32> to vector<8x256xbf16>
    %c0_1 = arith.constant 0 : index
    %c0_2 = arith.constant 0 : index
    %5 = vector.load %arg2[%c0_1, %c0_2] : memref<256x128xbf16, #tpu.memory_space<vmem>>, vector<256x128xbf16>
    %c0_3 = arith.constant 0 : index
    %c0_4 = arith.constant 0 : index
    %6 = vector.load %arg4[%c0_3, %c0_4] : memref<256x128xbf16, #tpu.memory_space<vmem>>, vector<256x128xbf16>
    %cst = arith.constant dense<0.000000e+00> : vector<8x128xf32>
    %7 = tpu.matmul %1, %5, %cst {dimension_numbers = #tpu.dot_dimension_numbers<[1], [0], [0], [1], [0, 0, 1, 1], [], []>} : vector<8x256xbf16>, vector<256x128xbf16>, vector<8x128xf32> -> vector<8x128xf32>
    %cst_5 = arith.constant dense<0.000000e+00> : vector<8x128xf32>
    %8 = tpu.matmul %4, %5, %cst_5 {dimension_numbers = #tpu.dot_dimension_numbers<[1], [0], [0], [1], [0, 0, 1, 1], [], []>} : vector<8x256xbf16>, vector<256x128xbf16>, vector<8x128xf32> -> vector<8x128xf32>
    %9 = arith.addf %7, %8 : vector<8x128xf32>
    %c0_6 = arith.constant 0 : index
    %c0_7 = arith.constant 0 : index
    %10 = vector.load %arg3[%c0_6, %c0_7] : memref<256x128xbf16, #tpu.memory_space<vmem>>, vector<256x128xbf16>
    %cst_8 = arith.constant dense<0.000000e+00> : vector<8x128xf32>
    %11 = tpu.matmul %1, %10, %cst_8 {dimension_numbers = #tpu.dot_dimension_numbers<[1], [0], [0], [1], [0, 0, 1, 1], [], []>} : vector<8x256xbf16>, vector<256x128xbf16>, vector<8x128xf32> -> vector<8x128xf32>
    %12 = arith.addf %9, %11 : vector<8x128xf32>
    %cst_9 = arith.constant dense<0.000000e+00> : vector<8x128xf32>
    %13 = tpu.matmul %1, %6, %cst_9 {dimension_numbers = #tpu.dot_dimension_numbers<[1], [0], [0], [1], [0, 0, 1, 1], [], []>} : vector<8x256xbf16>, vector<256x128xbf16>, vector<8x128xf32> -> vector<8x128xf32>
    %cst_10 = arith.constant dense<0.000000e+00> : vector<8x128xf32>
    %14 = tpu.matmul %4, %6, %cst_10 {dimension_numbers = #tpu.dot_dimension_numbers<[1], [0], [0], [1], [0, 0, 1, 1], [], []>} : vector<8x256xbf16>, vector<256x128xbf16>, vector<8x128xf32> -> vector<8x128xf32>
    %15 = arith.addf %13, %14 : vector<8x128xf32>
    %c0_11 = arith.constant 0 : index
    %c0_12 = arith.constant 0 : index
    %16 = vector.load %arg5[%c0_11, %c0_12] : memref<256x128xbf16, #tpu.memory_space<vmem>>, vector<256x128xbf16>
    %cst_13 = arith.constant dense<0.000000e+00> : vector<8x128xf32>
    %17 = tpu.matmul %1, %16, %cst_13 {dimension_numbers = #tpu.dot_dimension_numbers<[1], [0], [0], [1], [0, 0, 1, 1], [], []>} : vector<8x256xbf16>, vector<256x128xbf16>, vector<8x128xf32> -> vector<8x128xf32>
    %18 = arith.addf %15, %17 : vector<8x128xf32>
    %19 = arith.mulf %12, %12 : vector<8x128xf32>
    %20 = arith.mulf %18, %18 : vector<8x128xf32>
    %21 = arith.addf %19, %20 : vector<8x128xf32>
    %cst_14 = arith.constant 9.99999997E-7 : f32
    %22 = vector.broadcast %cst_14 : f32 to vector<8x128xf32>
    %23 = arith.addf %21, %22 : vector<8x128xf32>
    %24 = math.sqrt %23 : vector<8x128xf32>
    %c0_15 = arith.constant 0 : index
    %c0_16 = arith.constant 0 : index
    %25 = vector.load %arg6[%c0_15, %c0_16] : memref<128x128xf32, #tpu.memory_space<vmem>>, vector<128x128xf32>
    %cst_17 = arith.constant dense<0.000000e+00> : vector<8x128xf32>
    %26 = tpu.matmul %24, %25, %cst_17 {dimension_numbers = #tpu.dot_dimension_numbers<[1], [0], [0], [1], [0, 0, 1, 1], [], []>} : vector<8x128xf32>, vector<128x128xf32>, vector<8x128xf32> -> vector<8x128xf32>
    %cst_18 = arith.constant 9.99999974E-6 : f32
    %27 = vector.broadcast %cst_18 : f32 to vector<8x128xf32>
    %28 = arith.maximumf %26, %27 : vector<8x128xf32>
    %29 = math.log %28 : vector<8x128xf32>
    %c0_19 = arith.constant 0 : index
    %c0_20 = arith.constant 0 : index
    %30 = vector.load %arg7[%c0_19, %c0_20] : memref<8x128xf32, #tpu.memory_space<vmem>>, vector<8x128xf32>
    tpu.vector_store %arg7[%c0_19, %c0_20], %29 {strides = array<i32>} : memref<8x128xf32, #tpu.memory_space<vmem>>, vector<8x128xf32>,
    return
  }
  func.func @transform_0(%arg0: i32) -> (i32, i32) {
    %c0_i32 = arith.constant 0 : i32
    %c0_i32_0 = arith.constant 0 : i32
    return %arg0, %c0_i32 : i32, i32
  }
  func.func @transform_1(%arg0: i32) -> (i32, i32) {
    %c0_i32 = arith.constant 0 : i32
    %c0_i32_0 = arith.constant 0 : i32
    %c0_i32_1 = arith.constant 0 : i32
    return %c0_i32, %c0_i32_0 : i32, i32
  }
  func.func @transform_2(%arg0: i32) -> (i32, i32) {
    %c0_i32 = arith.constant 0 : i32
    %c0_i32_0 = arith.constant 0 : i32
    %c0_i32_1 = arith.constant 0 : i32
    return %c0_i32, %c0_i32_0 : i32, i32
  }
  func.func @transform_3(%arg0: i32) -> (i32, i32) {
    %c0_i32 = arith.constant 0 : i32
    %c0_i32_0 = arith.constant 0 : i32
    %c0_i32_1 = arith.constant 0 : i32
    return %c0_i32, %c0_i32_0 : i32, i32
  }
  func.func @transform_4(%arg0: i32) -> (i32, i32) {
    %c0_i32 = arith.constant 0 : i32
    %c0_i32_0 = arith.constant 0 : i32
    %c0_i32_1 = arith.constant 0 : i32
    return %c0_i32, %c0_i32_0 : i32, i32
  }
  func.func @transform_5(%arg0: i32) -> (i32, i32) {
    %c0_i32 = arith.constant 0 : i32
    %c0_i32_0 = arith.constant 0 : i32
    %c0_i32_1 = arith.constant 0 : i32
    return %c0_i32, %c0_i32_0 : i32, i32
  }
  func.func @transform_6(%arg0: i32) -> (i32, i32) {
    %c0_i32 = arith.constant 0 : i32
    %c0_i32_0 = arith.constant 0 : i32
    return %arg0, %c0_i32 : i32, i32
  }
}

</mosaic_0001>

<llo_original>
// kernel: _forward.1
$region0: #{_forward.1}
  #allocation0 [shape = 'u32[]', space=smem, size = 0x4, offset = 0x4, fixed_abs, tag = 'smem constant byte address 0x4 - core index']
  #allocation1 [shape = 'u32[144,128]{1,0:T(1,128)}', space=vmem, size = 0x12000, scoped, tag = 'internal scratch']
  %s0 = inlined_call_operand.vmem [shape: f32[16,256], index: 0, kind: input, shape index: {}]
  %s1 = inlined_call_operand.vmem [shape: bf16[256,128], index: 1, kind: input, shape index: {}]
  %s2 = inlined_call_operand.vmem [shape: bf16[256,128], index: 2, kind: input, shape index: {}]
  %s3 = inlined_call_operand.vmem [shape: bf16[256,128], index: 3, kind: input, shape index: {}]
  %s4 = inlined_call_operand.vmem [shape: bf16[256,128], index: 4, kind: input, shape index: {}]
  %s5 = inlined_call_operand.vmem [shape: f32[128,128], index: 5, kind: input, shape index: {}]
  %s6 = inlined_call_operand.vmem [shape: f32[16,128], index: 6, kind: output, shape index: {}]
  %s7 = sld [smem:[#allocation0]]
  $region57: #{_forward.1} parent=0
    _
  %s9 = ssub.s32 1, %s7
  %s10 = scalar_select 0, %s9, %s7
  loop: start=0, step=1, limit=4
  $region2: #{_forward.1} parent=0 // loop_pre_header
    _
  $region3: #{_forward.1} parent=0 // loop_header
    %s12 = sphi 0, %s16
    %p13 = scmp.ge.s32.totalorder %s12, 4
    %s22 = sphi 0, %s24
    %s25 = sphi 0, %s22
    %s26 = sphi 0, %s25
    %s42 = sphi 0, %s26
    %s46 = sphi 0, %s46
    %s48 = sphi 0, %s46
    %s49 = sphi 0, %s48
    %s63 = sphi 0, %s49
    %s67 = sphi 0, %s67
    %s69 = sphi 0, %s67
    %s70 = sphi 0, %s69
    %s84 = sphi 0, %s70
    %s88 = sphi 0, %s88
    %s90 = sphi 0, %s88
    %s91 = sphi 0, %s90
    %s105 = sphi 0, %s91
    %s109 = sphi 0, %s109
    %s111 = sphi 0, %s109
    %s112 = sphi 0, %s111
    %s126 = sphi 0, %s112
    %s130 = sphi 0, %s130
    %s132 = sphi 0, %s130
    %s133 = sphi 0, %s132
    %s147 = sphi 0, %s133
    %s153 = sphi 0, %s155
    %s156 = sphi 0, %s153
    %s157 = sphi 0, %s156
    %s173 = sphi 0, %s157
  $region4: #{_forward.1} parent=0 // loop_header_branch
    %15 = sbr.rel (%p13) target = $region8
  $region5: #{_forward.1} parent=0 // loop_body
    %s17 = ssub.s32 %s12, 1
    %s18 = ssub.s32 %s12, 2
    %s19 = sadd.s32 %s12, 1
    %s20 = ssub.s32 %s12, %s19
    %p21 = scmp.eq.s32.totalorder %s20, 0
    %s23 = sadd.s32 %s22, 1
    %s24 = scalar_select %p21, %s22, %s23
    %p27 = pneg %p21
    %p28 = scmp.eq.s32.totalorder %s12, 1
    %p29 = por %p27, %p28
    %p30 = scmp.ne.s32.totalorder %s22, %s25
    %p31 = scmp.eq.s32.totalorder %s12, 0
    %p32 = por %p30, %p31
    %p33 = scmp.ne.s32.totalorder %s22, %s25
    %p34 = scmp.eq.s32.totalorder %s17, 1
    %p35 = por %p33, %p34
    %p36 = scmp.ne.s32.totalorder %s25, %s26
    %p37 = scmp.eq.s32.totalorder %s17, 0
    %p38 = por %p36, %p37
    %p39 = scmp.ne.s32.totalorder %s25, %s26
    %p40 = scmp.eq.s32.totalorder %s18, 1
    %p41 = por %p39, %p40
    %p43 = scmp.ne.s32.totalorder %s26, %s42
    %p44 = scmp.eq.s32.totalorder %s18, 0
    %p45 = por %p43, %p44
    %s47 = sadd.s32 %s46, 1
    %p50 = scmp.eq.s32.totalorder %s12, 1
    %p51 = scmp.ne.s32.totalorder %s46, %s48
    %p52 = scmp.eq.s32.totalorder %s12, 0
    %p53 = por %p51, %p52
    %p54 = scmp.ne.s32.totalorder %s46, %s48
    %p55 = scmp.eq.s32.totalorder %s17, 1
    %p56 = por %p54, %p55
    %p57 = scmp.ne.s32.totalorder %s48, %s49
    %p58 = scmp.eq.s32.totalorder %s17, 0
    %p59 = por %p57, %p58
    %p60 = scmp.ne.s32.totalorder %s48, %s49
    %p61 = scmp.eq.s32.totalorder %s18, 1
    %p62 = por %p60, %p61
    %p64 = scmp.ne.s32.totalorder %s49, %s63
    %p65 = scmp.eq.s32.totalorder %s18, 0
    %p66 = por %p64, %p65
    %s68 = sadd.s32 %s67, 1
    %p71 = scmp.eq.s32.totalorder %s12, 1
    %p72 = scmp.ne.s32.totalorder %s67, %s69
    %p73 = scmp.eq.s32.totalorder %s12, 0
    %p74 = por %p72, %p73
    %p75 = scmp.ne.s32.totalorder %s67, %s69
    %p76 = scmp.eq.s32.totalorder %s17, 1
    %p77 = por %p75, %p76
    %p78 = scmp.ne.s32.totalorder %s69, %s70
    %p79 = scmp.eq.s32.totalorder %s17, 0
    %p80 = por %p78, %p79
    %p81 = scmp.ne.s32.totalorder %s69, %s70
    %p82 = scmp.eq.s32.totalorder %s18, 1
    %p83 = por %p81, %p82
    %p85 = scmp.ne.s32.totalorder %s70, %s84
    %p86 = scmp.eq.s32.totalorder %s18, 0
    %p87 = por %p85, %p86
    %s89 = sadd.s32 %s88, 1
    %p92 = scmp.eq.s32.totalorder %s12, 1
    %p93 = scmp.ne.s32.totalorder %s88, %s90
    %p94 = scmp.eq.s32.totalorder %s12, 0
    %p95 = por %p93, %p94
    %p96 = scmp.ne.s32.totalorder %s88, %s90
    %p97 = scmp.eq.s32.totalorder %s17, 1
    %p98 = por %p96, %p97
    %p99 = scmp.ne.s32.totalorder %s90, %s91
    %p100 = scmp.eq.s32.totalorder %s17, 0
    %p101 = por %p99, %p100
    %p102 = scmp.ne.s32.totalorder %s90, %s91
    %p103 = scmp.eq.s32.totalorder %s18, 1
    %p104 = por %p102, %p103
    %p106 = scmp.ne.s32.totalorder %s91, %s105
    %p107 = scmp.eq.s32.totalorder %s18, 0
    %p108 = por %p106, %p107
    %s110 = sadd.s32 %s109, 1
    %p113 = scmp.eq.s32.totalorder %s12, 1
    %p114 = scmp.ne.s32.totalorder %s109, %s111
    %p115 = scmp.eq.s32.totalorder %s12, 0
    %p116 = por %p114, %p115
    %p117 = scmp.ne.s32.totalorder %s109, %s111
    %p118 = scmp.eq.s32.totalorder %s17, 1
    %p119 = por %p117, %p118
    %p120 = scmp.ne.s32.totalorder %s111, %s112
    %p121 = scmp.eq.s32.totalorder %s17, 0
    %p122 = por %p120, %p121
    %p123 = scmp.ne.s32.totalorder %s111, %s112
    %p124 = scmp.eq.s32.totalorder %s18, 1
    %p125 = por %p123, %p124
    %p127 = scmp.ne.s32.totalorder %s112, %s126
    %p128 = scmp.eq.s32.totalorder %s18, 0
    %p129 = por %p127, %p128
    %s131 = sadd.s32 %s130, 1
    %p134 = scmp.eq.s32.totalorder %s12, 1
    %p135 = scmp.ne.s32.totalorder %s130, %s132
    %p136 = scmp.eq.s32.totalorder %s12, 0
    %p137 = por %p135, %p136
    %p138 = scmp.ne.s32.totalorder %s130, %s132
    %p139 = scmp.eq.s32.totalorder %s17, 1
    %p140 = por %p138, %p139
    %p141 = scmp.ne.s32.totalorder %s132, %s133
    %p142 = scmp.eq.s32.totalorder %s17, 0
    %p143 = por %p141, %p142
    %p144 = scmp.ne.s32.totalorder %s132, %s133
    %p145 = scmp.eq.s32.totalorder %s18, 1
    %p146 = por %p144, %p145
    %p148 = scmp.ne.s32.totalorder %s133, %s147
    %p149 = scmp.eq.s32.totalorder %s18, 0
    %p150 = por %p148, %p149
    %s151 = ssub.s32 %s12, %s19
    %p152 = scmp.eq.s32.totalorder %s151, 0
    %s154 = sadd.s32 %s153, 1
    %s155 = scalar_select %p152, %s153, %s154
    %p158 = pneg %p152
    %p159 = scmp.eq.s32.totalorder %s12, 1
    %p160 = por %p158, %p159
    %p161 = scmp.ne.s32.totalorder %s153, %s156
    %p162 = scmp.eq.s32.totalorder %s12, 0
    %p163 = por %p161, %p162
    %p164 = scmp.ne.s32.totalorder %s153, %s156
    %p165 = scmp.eq.s32.totalorder %s17, 1
    %p166 = por %p164, %p165
    %p167 = scmp.ne.s32.totalorder %s156, %s157
    %p168 = scmp.eq.s32.totalorder %s17, 0
    %p169 = por %p167, %p168
    %p170 = scmp.ne.s32.totalorder %s156, %s157
    %p171 = scmp.eq.s32.totalorder %s18, 1
    %p172 = por %p170, %p171
    %p174 = scmp.ne.s32.totalorder %s157, %s173
    %p175 = scmp.eq.s32.totalorder %s18, 0
    %p176 = por %p174, %p175
    %p177 = scmp.le.s32.totalorder 1, %s12
    %p178 = scmp.lt.s32.totalorder %s12, 3
    %p179 = pnand %p177, %p178
    %p180 = pneg %p179
    // Predicated region
    $region9: #{_forward.1} parent=5 // pred_check
      _
    $region10: #{_forward.1} parent=5 // pred_check_branch
      %182 = sbr.rel (%p179) target = $region12
    $region11: #{_forward.1} parent=5 // pred_region
      %s183 = ssub.s32 %s12, 1
      // Predicated region
      $region13: #{_forward.1} parent=11 // pred_check
        %p184 = pneg %p59
      $region14: #{_forward.1} parent=11 // pred_check_branch
        %186 = sbr.rel (%p184) target = $region16
      $region15: #{_forward.1} parent=11 // pred_region
        _
      $region16: #{_forward.1} parent=11 // pred_fallthru
        _
      // Predicated region
      $region17: #{_forward.1} parent=11 // pred_check
        %p187 = pneg %p80
      $region18: #{_forward.1} parent=11 // pred_check_branch
        %189 = sbr.rel (%p187) target = $region20
      $region19: #{_forward.1} parent=11 // pred_region
        _
      $region20: #{_forward.1} parent=11 // pred_fallthru
        _
      // Predicated region
      $region21: #{_forward.1} parent=11 // pred_check
        %p190 = pneg %p101
      $region22: #{_forward.1} parent=11 // pred_check_branch
        %192 = sbr.rel (%p190) target = $region24
      $region23: #{_forward.1} parent=11 // pred_region
        _
      $region24: #{_forward.1} parent=11 // pred_fallthru
        _
      // Predicated region
      $region25: #{_forward.1} parent=11 // pred_check
        %p193 = pneg %p122
      $region26: #{_forward.1} parent=11 // pred_check_branch
        %195 = sbr.rel (%p193) target = $region28
      $region27: #{_forward.1} parent=11 // pred_region
        _
      $region28: #{_forward.1} parent=11 // pred_fallthru
        _
      // Predicated region
      $region29: #{_forward.1} parent=11 // pred_check
        %p196 = pneg %p143
      $region30: #{_forward.1} parent=11 // pred_check_branch
        %198 = sbr.rel (%p196) target = $region32
      $region31: #{_forward.1} parent=11 // pred_region
        _
      $region32: #{_forward.1} parent=11 // pred_fallthru
        _
    $region12: #{_forward.1} parent=5 // pred_fallthru
      _
    %p199 = scmp.lt.s32.totalorder %s12, 2
    // Predicated region
    $region33: #{_forward.1} parent=5 // pred_check
      %p200 = pneg %p199
    $region34: #{_forward.1} parent=5 // pred_check_branch
      %202 = sbr.rel (%p200) target = $region36
    $region35: #{_forward.1} parent=5 // pred_region
      // Predicated region
      $region37: #{_forward.1} parent=35 // pred_check
        %p203 = pneg %p32
      $region38: #{_forward.1} parent=35 // pred_check_branch
        %205 = sbr.rel (%p203) target = $region40
      $region39: #{_forward.1} parent=35 // pred_region
        %p206 = scmp.lt.s32.totalorder %s12, 1
        %s207 = scalar_select %p206, %s12, 1
        %s208 = smul.addr %s207, 2
        %s209 = smul.addr %s208, 8
        %s210 = scalar_lea.vmem %s0, %s209
      $region40: #{_forward.1} parent=35 // pred_fallthru
        _
    $region36: #{_forward.1} parent=5 // pred_fallthru
      _
    %p211 = scmp.le.s32.totalorder 1, %s12
    %p212 = scmp.lt.s32.totalorder %s12, 3
    %p213 = pnand %p211, %p212
    %p214 = pneg %p213
    // Predicated region
    $region41: #{_forward.1} parent=5 // pred_check
      _
    $region42: #{_forward.1} parent=5 // pred_check_branch
      %216 = sbr.rel (%p213) target = $region44
    $region43: #{_forward.1} parent=5 // pred_region
      %s217 = ssub.s32 %s12, 1
      %p218 = scmp.lt.s32.totalorder %s17, 1
      %s219 = scalar_select %p218, %s17, 1
      %s220 = smul.addr %s219, 2
      %s221 = smul.addr %s220, 8
      %s222 = scalar_lea.vmem %s0, %s221
      %p223 = pneg %p38
      %p224 = pneg %p35
      %p225 = pneg %p59
      %p226 = pneg %p56
      %p227 = pneg %p80
      %p228 = pneg %p77
      %p229 = pneg %p101
      %p230 = pneg %p98
      %p231 = pneg %p122
      %p232 = pneg %p119
      %p233 = pneg %p143
      %p234 = pneg %p140
      %p235 = pneg %p169
      %p236 = pneg %p166
      %p237 = scmp.lt.s32.totalorder %s17, 1
      %s238 = scalar_select %p237, %s17, 1
      %s239 = smul.addr %s238, 8
      %s240 = scalar_lea.vmem %s6, %s239
      %p241 = scmp.lt.s32.totalorder %s17, 1
      %s242 = scalar_select %p241, %s17, 1
      %s243 = smul.addr %s242, 2
      %s244 = smul.addr %s243, 8
      %s245 = scalar_lea.vmem %s0, %s244
      %p246 = scmp.lt.s32.totalorder %s17, 1
      %s247 = scalar_select %p246, %s17, 1
      %s248 = smul.addr %s247, 8
      %s249 = scalar_lea.vmem %s6, %s248
      %v251 = vld [vmem:[%s245] sm:$0xff]
      %v252 = vld [vmem:[%s245 + $0x8] sm:$0xff]
      %v253 = vpack.c.bf16 %v251, %v251
      %v254 = vpack.c.bf16 %v252, %v252
      %v255 = vunpack.c.l.bf16 %v253
      %v256 = vunpack.c.l.bf16 %v254
      %v257 = vsub.f32 %v251, %v255
      %v258 = vsub.f32 %v252, %v256
      %v259 = vpack.c.bf16 %v257, %v257
      %v260 = vpack.c.bf16 %v258, %v258
      %v261 = vld [vmem:[%s1] sm:$0xf]
      %v262 = vld [vmem:[%s1 + $0x4] sm:$0xf]
      %v263 = vld [vmem:[%s1 + $0x8] sm:$0xf]
      %v264 = vld [vmem:[%s1 + $0xc] sm:$0xf]
      %v265 = vld [vmem:[%s1 + $0x10] sm:$0xf]
      %v266 = vld [vmem:[%s1 + $0x14] sm:$0xf]
      %v267 = vld [vmem:[%s1 + $0x18] sm:$0xf]
      %v268 = vld [vmem:[%s1 + $0x1c] sm:$0xf]
      %v269 = vld [vmem:[%s1 + $0x20] sm:$0xf]
      %v270 = vld [vmem:[%s1 + $0x24] sm:$0xf]
      %v271 = vld [vmem:[%s1 + $0x28] sm:$0xf]
      %v272 = vld [vmem:[%s1 + $0x2c] sm:$0xf]
      %v273 = vld [vmem:[%s1 + $0x30] sm:$0xf]
      %v274 = vld [vmem:[%s1 + $0x34] sm:$0xf]
      %v275 = vld [vmem:[%s1 + $0x38] sm:$0xf]
      %v276 = vld [vmem:[%s1 + $0x3c] sm:$0xf]
      %v277 = vld [vmem:[%s1 + $0x40] sm:$0xf]
      %v278 = vld [vmem:[%s1 + $0x44] sm:$0xf]
      %v279 = vld [vmem:[%s1 + $0x48] sm:$0xf]
      %v280 = vld [vmem:[%s1 + $0x4c] sm:$0xf]
      %v281 = vld [vmem:[%s1 + $0x50] sm:$0xf]
      %v282 = vld [vmem:[%s1 + $0x54] sm:$0xf]
      %v283 = vld [vmem:[%s1 + $0x58] sm:$0xf]
      %v284 = vld [vmem:[%s1 + $0x5c] sm:$0xf]
      %v285 = vld [vmem:[%s1 + $0x60] sm:$0xf]
      %v286 = vld [vmem:[%s1 + $0x64] sm:$0xf]
      %v287 = vld [vmem:[%s1 + $0x68] sm:$0xf]
      %v288 = vld [vmem:[%s1 + $0x6c] sm:$0xf]
      %v289 = vld [vmem:[%s1 + $0x70] sm:$0xf]
      %v290 = vld [vmem:[%s1 + $0x74] sm:$0xf]
      %v291 = vld [vmem:[%s1 + $0x78] sm:$0xf]
      %v292 = vld [vmem:[%s1 + $0x7c] sm:$0xf]
      %v293 = vld [vmem:[%s3] sm:$0xf]
      %v294 = vld [vmem:[%s3 + $0x4] sm:$0xf]
      %v295 = vld [vmem:[%s3 + $0x8] sm:$0xf]
      %v296 = vld [vmem:[%s3 + $0xc] sm:$0xf]
      %v297 = vld [vmem:[%s3 + $0x10] sm:$0xf]
      %v298 = vld [vmem:[%s3 + $0x14] sm:$0xf]
      %v299 = vld [vmem:[%s3 + $0x18] sm:$0xf]
      %v300 = vld [vmem:[%s3 + $0x1c] sm:$0xf]
      %v301 = vld [vmem:[%s3 + $0x20] sm:$0xf]
      %v302 = vld [vmem:[%s3 + $0x24] sm:$0xf]
      %v303 = vld [vmem:[%s3 + $0x28] sm:$0xf]
      %v304 = vld [vmem:[%s3 + $0x2c] sm:$0xf]
      %v305 = vld [vmem:[%s3 + $0x30] sm:$0xf]
      %v306 = vld [vmem:[%s3 + $0x34] sm:$0xf]
      %v307 = vld [vmem:[%s3 + $0x38] sm:$0xf]
      %v308 = vld [vmem:[%s3 + $0x3c] sm:$0xf]
      %v309 = vld [vmem:[%s3 + $0x40] sm:$0xf]
      %v310 = vld [vmem:[%s3 + $0x44] sm:$0xf]
      %v311 = vld [vmem:[%s3 + $0x48] sm:$0xf]
      %v312 = vld [vmem:[%s3 + $0x4c] sm:$0xf]
      %v313 = vld [vmem:[%s3 + $0x50] sm:$0xf]
      %v314 = vld [vmem:[%s3 + $0x54] sm:$0xf]
      %v315 = vld [vmem:[%s3 + $0x58] sm:$0xf]
      %v316 = vld [vmem:[%s3 + $0x5c] sm:$0xf]
      %v317 = vld [vmem:[%s3 + $0x60] sm:$0xf]
      %v318 = vld [vmem:[%s3 + $0x64] sm:$0xf]
      %v319 = vld [vmem:[%s3 + $0x68] sm:$0xf]
      %v320 = vld [vmem:[%s3 + $0x6c] sm:$0xf]
      %v321 = vld [vmem:[%s3 + $0x70] sm:$0xf]
      %v322 = vld [vmem:[%s3 + $0x74] sm:$0xf]
      %v323 = vld [vmem:[%s3 + $0x78] sm:$0xf]
      %v324 = vld [vmem:[%s3 + $0x7c] sm:$0xf]
      %v357 = vunpack.c.l.b16 %v261
      %v358 = vunpack.c.l.b16 %v262
      %v359 = vunpack.c.l.b16 %v263
      %v360 = vunpack.c.l.b16 %v264
      %v361 = vunpack.c.l.b16 %v265
      %v362 = vunpack.c.l.b16 %v266
      %v363 = vunpack.c.l.b16 %v267
      %v364 = vunpack.c.l.b16 %v268
      %v365 = vunpack.c.l.b16 %v269
      %v366 = vunpack.c.l.b16 %v270
      %v367 = vunpack.c.l.b16 %v271
      %v368 = vunpack.c.l.b16 %v272
      %v369 = vunpack.c.l.b16 %v273
      %v370 = vunpack.c.l.b16 %v274
      %v371 = vunpack.c.l.b16 %v275
      %v372 = vunpack.c.l.b16 %v276
      %v373 = vunpack.c.l.b16 %v277
      %v374 = vunpack.c.l.b16 %v278
      %v375 = vunpack.c.l.b16 %v279
      %v376 = vunpack.c.l.b16 %v280
      %v377 = vunpack.c.l.b16 %v281
      %v378 = vunpack.c.l.b16 %v282
      %v379 = vunpack.c.l.b16 %v283
      %v380 = vunpack.c.l.b16 %v284
      %v381 = vunpack.c.l.b16 %v285
      %v382 = vunpack.c.l.b16 %v286
      %v383 = vunpack.c.l.b16 %v287
      %v384 = vunpack.c.l.b16 %v288
      %v385 = vunpack.c.l.b16 %v289
      %v386 = vunpack.c.l.b16 %v290
      %v387 = vunpack.c.l.b16 %v291
      %v388 = vunpack.c.l.b16 %v292
      %v389 = vpack.c.b16 %v358, %v357
      %v390 = vpack.c.b16 %v360, %v359
      %v391 = vpack.c.b16 %v362, %v361
      %v392 = vpack.c.b16 %v364, %v363
      %v393 = vpack.c.b16 %v366, %v365
      %v394 = vpack.c.b16 %v368, %v367
      %v395 = vpack.c.b16 %v370, %v369
      %v396 = vpack.c.b16 %v372, %v371
      %v397 = vpack.c.b16 %v374, %v373
      %v398 = vpack.c.b16 %v376, %v375
      %v399 = vpack.c.b16 %v378, %v377
      %v400 = vpack.c.b16 %v380, %v379
      %v401 = vpack.c.b16 %v382, %v381
      %v402 = vpack.c.b16 %v384, %v383
      %v403 = vpack.c.b16 %v386, %v385
      %v404 = vpack.c.b16 %v388, %v387
      %421 = vmatprep.subr.bf16.mxu0 0
      %422 = vmatpush1.bf16.msra.mxu0 %v396
      %423 = vmatprep.subr.bf16.mxu0 0
      %424 = vmatpush1.bf16.msra.mxu0 %v395
      %425 = vmatprep.subr.bf16.mxu0 0
      %426 = vmatpush1.bf16.msra.mxu0 %v394
      %427 = vmatprep.subr.bf16.mxu0 0
      %428 = vmatpush1.bf16.msra.mxu0 %v393
      %429 = vmatprep.subr.bf16.mxu0 0
      %430 = vmatpush1.bf16.msra.mxu0 %v392
      %431 = vmatprep.subr.bf16.mxu0 0
      %432 = vmatpush1.bf16.msra.mxu0 %v391
      %433 = vmatprep.subr.bf16.mxu0 0
      %434 = vmatpush1.bf16.msra.mxu0 %v390
      %435 = vmatprep.subr.bf16.mxu0 0
      %436 = vmatpush1.bf16.msra.mxu0 %v389
      %437 = vmatprep.subr.bf16.mxu0 0
      %438 = vmatpush2.bf16.msra.mxu0 %v404
      %439 = vmatprep.subr.bf16.mxu0 0
      %440 = vmatpush2.bf16.msra.mxu0 %v403
      %441 = vmatprep.subr.bf16.mxu0 0
      %442 = vmatpush2.bf16.msra.mxu0 %v402
      %443 = vmatprep.subr.bf16.mxu0 0
      %444 = vmatpush2.bf16.msra.mxu0 %v401
      %445 = vmatprep.subr.bf16.mxu0 0
      %446 = vmatpush2.bf16.msra.mxu0 %v400
      %447 = vmatprep.subr.bf16.mxu0 0
      %448 = vmatpush2.bf16.msra.mxu0 %v399
      %449 = vmatprep.subr.bf16.mxu0 0
      %450 = vmatpush2.bf16.msra.mxu0 %v398
      %451 = vmatprep.subr.bf16.mxu0 0
      %452 = vmatpush2.bf16.msra.mxu0 %v397
      %453 = vmatprep.mubr.bf16.mxu0 %v260
      %454 = vmatmul.mubr.bf16.gmra.mxu0 %v259
      %v455 = vpop.f32.mrf.mxu0
      %v456 = vadd.f32 0.0, %v455
      %v457 = vpop.f32.mrf.mxu0
      %v458 = vpop.f32.mrf.mxu0
      %v459 = vpop.f32.mrf.mxu0
      %460 = vdwg.mxu0
      %461 = vmatprep.subr.bf16.mxu0 0
      %462 = vmatpush1.bf16.msra.mxu0 %v396
      %463 = vmatprep.subr.bf16.mxu0 0
      %464 = vmatpush1.bf16.msra.mxu0 %v395
      %465 = vmatprep.subr.bf16.mxu0 0
      %466 = vmatpush1.bf16.msra.mxu0 %v394
      %467 = vmatprep.subr.bf16.mxu0 0
      %468 = vmatpush1.bf16.msra.mxu0 %v393
      %469 = vmatprep.subr.bf16.mxu0 0
      %470 = vmatpush1.bf16.msra.mxu0 %v392
      %471 = vmatprep.subr.bf16.mxu0 0
      %472 = vmatpush1.bf16.msra.mxu0 %v391
      %473 = vmatprep.subr.bf16.mxu0 0
      %474 = vmatpush1.bf16.msra.mxu0 %v390
      %475 = vmatprep.subr.bf16.mxu0 0
      %476 = vmatpush1.bf16.msra.mxu0 %v389
      %477 = vmatprep.subr.bf16.mxu0 0
      %478 = vmatpush2.bf16.msra.mxu0 %v404
      %479 = vmatprep.subr.bf16.mxu0 0
      %480 = vmatpush2.bf16.msra.mxu0 %v403
      %481 = vmatprep.subr.bf16.mxu0 0
      %482 = vmatpush2.bf16.msra.mxu0 %v402
      %483 = vmatprep.subr.bf16.mxu0 0
      %484 = vmatpush2.bf16.msra.mxu0 %v401
      %485 = vmatprep.subr.bf16.mxu0 0
      %486 = vmatpush2.bf16.msra.mxu0 %v400
      %487 = vmatprep.subr.bf16.mxu0 0
      %488 = vmatpush2.bf16.msra.mxu0 %v399
      %489 = vmatprep.subr.bf16.mxu0 0
      %490 = vmatpush2.bf16.msra.mxu0 %v398
      %491 = vmatprep.subr.bf16.mxu0 0
      %492 = vmatpush2.bf16.msra.mxu0 %v397
      %493 = vmatprep.mubr.bf16.mxu0 %v254
      %494 = vmatmul.mubr.bf16.gmra.mxu0 %v253
      %v495 = vpop.f32.mrf.mxu0
      %v496 = vadd.f32 %v456, %v495
      %v497 = vpop.f32.mrf.mxu0
      %v498 = vpop.f32.mrf.mxu0
      %v499 = vpop.f32.mrf.mxu0
      %500 = vdwg.mxu0
      %v501 = vld [vmem:[%s2] sm:$0xf]
      %v502 = vld [vmem:[%s2 + $0x4] sm:$0xf]
      %v503 = vld [vmem:[%s2 + $0x8] sm:$0xf]
      %v504 = vld [vmem:[%s2 + $0xc] sm:$0xf]
      %v505 = vld [vmem:[%s2 + $0x10] sm:$0xf]
      %v506 = vld [vmem:[%s2 + $0x14] sm:$0xf]
      %v507 = vld [vmem:[%s2 + $0x18] sm:$0xf]
      %v508 = vld [vmem:[%s2 + $0x1c] sm:$0xf]
      %v509 = vld [vmem:[%s2 + $0x20] sm:$0xf]
      %v510 = vld [vmem:[%s2 + $0x24] sm:$0xf]
      %v511 = vld [vmem:[%s2 + $0x28] sm:$0xf]
      %v512 = vld [vmem:[%s2 + $0x2c] sm:$0xf]
      %v513 = vld [vmem:[%s2 + $0x30] sm:$0xf]
      %v514 = vld [vmem:[%s2 + $0x34] sm:$0xf]
      %v515 = vld [vmem:[%s2 + $0x38] sm:$0xf]
      %v516 = vld [vmem:[%s2 + $0x3c] sm:$0xf]
      %v517 = vld [vmem:[%s2 + $0x40] sm:$0xf]
      %v518 = vld [vmem:[%s2 + $0x44] sm:$0xf]
      %v519 = vld [vmem:[%s2 + $0x48] sm:$0xf]
      %v520 = vld [vmem:[%s2 + $0x4c] sm:$0xf]
      %v521 = vld [vmem:[%s2 + $0x50] sm:$0xf]
      %v522 = vld [vmem:[%s2 + $0x54] sm:$0xf]
      %v523 = vld [vmem:[%s2 + $0x58] sm:$0xf]
      %v524 = vld [vmem:[%s2 + $0x5c] sm:$0xf]
      %v525 = vld [vmem:[%s2 + $0x60] sm:$0xf]
      %v526 = vld [vmem:[%s2 + $0x64] sm:$0xf]
      %v527 = vld [vmem:[%s2 + $0x68] sm:$0xf]
      %v528 = vld [vmem:[%s2 + $0x6c] sm:$0xf]
      %v529 = vld [vmem:[%s2 + $0x70] sm:$0xf]
      %v530 = vld [vmem:[%s2 + $0x74] sm:$0xf]
      %v531 = vld [vmem:[%s2 + $0x78] sm:$0xf]
      %v532 = vld [vmem:[%s2 + $0x7c] sm:$0xf]
      %v565 = vunpack.c.l.b16 %v501
      %v566 = vunpack.c.l.b16 %v502
      %v567 = vunpack.c.l.b16 %v503
      %v568 = vunpack.c.l.b16 %v504
      %v569 = vunpack.c.l.b16 %v505
      %v570 = vunpack.c.l.b16 %v506
      %v571 = vunpack.c.l.b16 %v507
      %v572 = vunpack.c.l.b16 %v508
      %v573 = vunpack.c.l.b16 %v509
      %v574 = vunpack.c.l.b16 %v510
      %v575 = vunpack.c.l.b16 %v511
      %v576 = vunpack.c.l.b16 %v512
      %v577 = vunpack.c.l.b16 %v513
      %v578 = vunpack.c.l.b16 %v514
      %v579 = vunpack.c.l.b16 %v515
      %v580 = vunpack.c.l.b16 %v516
      %v581 = vunpack.c.l.b16 %v517
      %v582 = vunpack.c.l.b16 %v518
      %v583 = vunpack.c.l.b16 %v519
      %v584 = vunpack.c.l.b16 %v520
      %v585 = vunpack.c.l.b16 %v521
      %v586 = vunpack.c.l.b16 %v522
      %v587 = vunpack.c.l.b16 %v523
      %v588 = vunpack.c.l.b16 %v524
      %v589 = vunpack.c.l.b16 %v525
      %v590 = vunpack.c.l.b16 %v526
      %v591 = vunpack.c.l.b16 %v527
      %v592 = vunpack.c.l.b16 %v528
      %v593 = vunpack.c.l.b16 %v529
      %v594 = vunpack.c.l.b16 %v530
      %v595 = vunpack.c.l.b16 %v531
      %v596 = vunpack.c.l.b16 %v532
      %v597 = vpack.c.b16 %v566, %v565
      %v598 = vpack.c.b16 %v568, %v567
      %v599 = vpack.c.b16 %v570, %v569
      %v600 = vpack.c.b16 %v572, %v571
      %v601 = vpack.c.b16 %v574, %v573
      %v602 = vpack.c.b16 %v576, %v575
      %v603 = vpack.c.b16 %v578, %v577
      %v604 = vpack.c.b16 %v580, %v579
      %v605 = vpack.c.b16 %v582, %v581
      %v606 = vpack.c.b16 %v584, %v583
      %v607 = vpack.c.b16 %v586, %v585
      %v608 = vpack.c.b16 %v588, %v587
      %v609 = vpack.c.b16 %v590, %v589
      %v610 = vpack.c.b16 %v592, %v591
      %v611 = vpack.c.b16 %v594, %v593
      %v612 = vpack.c.b16 %v596, %v595
      %629 = vmatprep.subr.bf16.mxu0 0
      %630 = vmatpush1.bf16.msra.mxu0 %v604
      %631 = vmatprep.subr.bf16.mxu0 0
      %632 = vmatpush1.bf16.msra.mxu0 %v603
      %633 = vmatprep.subr.bf16.mxu0 0
      %634 = vmatpush1.bf16.msra.mxu0 %v602
      %635 = vmatprep.subr.bf16.mxu0 0
      %636 = vmatpush1.bf16.msra.mxu0 %v601
      %637 = vmatprep.subr.bf16.mxu0 0
      %638 = vmatpush1.bf16.msra.mxu0 %v600
      %639 = vmatprep.subr.bf16.mxu0 0
      %640 = vmatpush1.bf16.msra.mxu0 %v599
      %641 = vmatprep.subr.bf16.mxu0 0
      %642 = vmatpush1.bf16.msra.mxu0 %v598
      %643 = vmatprep.subr.bf16.mxu0 0
      %644 = vmatpush1.bf16.msra.mxu0 %v597
      %645 = vmatprep.subr.bf16.mxu0 0
      %646 = vmatpush2.bf16.msra.mxu0 %v612
      %647 = vmatprep.subr.bf16.mxu0 0
      %648 = vmatpush2.bf16.msra.mxu0 %v611
      %649 = vmatprep.subr.bf16.mxu0 0
      %650 = vmatpush2.bf16.msra.mxu0 %v610
      %651 = vmatprep.subr.bf16.mxu0 0
      %652 = vmatpush2.bf16.msra.mxu0 %v609
      %653 = vmatprep.subr.bf16.mxu0 0
      %654 = vmatpush2.bf16.msra.mxu0 %v608
      %655 = vmatprep.subr.bf16.mxu0 0
      %656 = vmatpush2.bf16.msra.mxu0 %v607
      %657 = vmatprep.subr.bf16.mxu0 0
      %658 = vmatpush2.bf16.msra.mxu0 %v606
      %659 = vmatprep.subr.bf16.mxu0 0
      %660 = vmatpush2.bf16.msra.mxu0 %v605
      %661 = vmatprep.mubr.bf16.mxu0 %v254
      %662 = vmatmul.mubr.bf16.gmra.mxu0 %v253
      %v663 = vpop.f32.mrf.mxu0
      %v664 = vadd.f32 0.0, %v663
      %v665 = vpop.f32.mrf.mxu0
      %v666 = vpop.f32.mrf.mxu0
      %v667 = vpop.f32.mrf.mxu0
      %668 = vdwg.mxu0
      %v669 = vadd.f32 %v496, %v664
      %v702 = vunpack.c.l.b16 %v293
      %v703 = vunpack.c.l.b16 %v294
      %v704 = vunpack.c.l.b16 %v295
      %v705 = vunpack.c.l.b16 %v296
      %v706 = vunpack.c.l.b16 %v297
      %v707 = vunpack.c.l.b16 %v298
      %v708 = vunpack.c.l.b16 %v299
      %v709 = vunpack.c.l.b16 %v300
      %v710 = vunpack.c.l.b16 %v301
      %v711 = vunpack.c.l.b16 %v302
      %v712 = vunpack.c.l.b16 %v303
      %v713 = vunpack.c.l.b16 %v304
      %v714 = vunpack.c.l.b16 %v305
      %v715 = vunpack.c.l.b16 %v306
      %v716 = vunpack.c.l.b16 %v307
      %v717 = vunpack.c.l.b16 %v308
      %v718 = vunpack.c.l.b16 %v309
      %v719 = vunpack.c.l.b16 %v310
      %v720 = vunpack.c.l.b16 %v311
      %v721 = vunpack.c.l.b16 %v312
      %v722 = vunpack.c.l.b16 %v313
      %v723 = vunpack.c.l.b16 %v314
      %v724 = vunpack.c.l.b16 %v315
      %v725 = vunpack.c.l.b16 %v316
      %v726 = vunpack.c.l.b16 %v317
      %v727 = vunpack.c.l.b16 %v318
      %v728 = vunpack.c.l.b16 %v319
      %v729 = vunpack.c.l.b16 %v320
      %v730 = vunpack.c.l.b16 %v321
      %v731 = vunpack.c.l.b16 %v322
      %v732 = vunpack.c.l.b16 %v323
      %v733 = vunpack.c.l.b16 %v324
      %v734 = vpack.c.b16 %v703, %v702
      %v735 = vpack.c.b16 %v705, %v704
      %v736 = vpack.c.b16 %v707, %v706
      %v737 = vpack.c.b16 %v709, %v708
      %v738 = vpack.c.b16 %v711, %v710
      %v739 = vpack.c.b16 %v713, %v712
      %v740 = vpack.c.b16 %v715, %v714
      %v741 = vpack.c.b16 %v717, %v716
      %v742 = vpack.c.b16 %v719, %v718
      %v743 = vpack.c.b16 %v721, %v720
      %v744 = vpack.c.b16 %v723, %v722
      %v745 = vpack.c.b16 %v725, %v724
      %v746 = vpack.c.b16 %v727, %v726
      %v747 = vpack.c.b16 %v729, %v728
      %v748 = vpack.c.b16 %v731, %v730
      %v749 = vpack.c.b16 %v733, %v732
      %766 = vmatprep.subr.bf16.mxu0 0
      %767 = vmatpush1.bf16.msra.mxu0 %v741
      %768 = vmatprep.subr.bf16.mxu0 0
      %769 = vmatpush1.bf16.msra.mxu0 %v740
      %770 = vmatprep.subr.bf16.mxu0 0
      %771 = vmatpush1.bf16.msra.mxu0 %v739
      %772 = vmatprep.subr.bf16.mxu0 0
      %773 = vmatpush1.bf16.msra.mxu0 %v738
      %774 = vmatprep.subr.bf16.mxu0 0
      %775 = vmatpush1.bf16.msra.mxu0 %v737
      %776 = vmatprep.subr.bf16.mxu0 0
      %777 = vmatpush1.bf16.msra.mxu0 %v736
      %778 = vmatprep.subr.bf16.mxu0 0
      %779 = vmatpush1.bf16.msra.mxu0 %v735
      %780 = vmatprep.subr.bf16.mxu0 0
      %781 = vmatpush1.bf16.msra.mxu0 %v734
      %782 = vmatprep.subr.bf16.mxu0 0
      %783 = vmatpush2.bf16.msra.mxu0 %v749
      %784 = vmatprep.subr.bf16.mxu0 0
      %785 = vmatpush2.bf16.msra.mxu0 %v748
      %786 = vmatprep.subr.bf16.mxu0 0
      %787 = vmatpush2.bf16.msra.mxu0 %v747
      %788 = vmatprep.subr.bf16.mxu0 0
      %789 = vmatpush2.bf16.msra.mxu0 %v746
      %790 = vmatprep.subr.bf16.mxu0 0
      %791 = vmatpush2.bf16.msra.mxu0 %v745
      %792 = vmatprep.subr.bf16.mxu0 0
      %793 = vmatpush2.bf16.msra.mxu0 %v744
      %794 = vmatprep.subr.bf16.mxu0 0
      %795 = vmatpush2.bf16.msra.mxu0 %v743
      %796 = vmatprep.subr.bf16.mxu0 0
      %797 = vmatpush2.bf16.msra.mxu0 %v742
      %798 = vmatprep.mubr.bf16.mxu0 %v260
      %799 = vmatmul.mubr.bf16.gmra.mxu0 %v259
      %v800 = vpop.f32.mrf.mxu0
      %v801 = vadd.f32 0.0, %v800
      %v802 = vpop.f32.mrf.mxu0
      %v803 = vpop.f32.mrf.mxu0
      %v804 = vpop.f32.mrf.mxu0
      %805 = vdwg.mxu0
      %806 = vmatprep.subr.bf16.mxu0 0
      %807 = vmatpush1.bf16.msra.mxu0 %v741
      %808 = vmatprep.subr.bf16.mxu0 0
      %809 = vmatpush1.bf16.msra.mxu0 %v740
      %810 = vmatprep.subr.bf16.mxu0 0
      %811 = vmatpush1.bf16.msra.mxu0 %v739
      %812 = vmatprep.subr.bf16.mxu0 0
      %813 = vmatpush1.bf16.msra.mxu0 %v738
      %814 = vmatprep.subr.bf16.mxu0 0
      %815 = vmatpush1.bf16.msra.mxu0 %v737
      %816 = vmatprep.subr.bf16.mxu0 0
      %817 = vmatpush1.bf16.msra.mxu0 %v736
      %818 = vmatprep.subr.bf16.mxu0 0
      %819 = vmatpush1.bf16.msra.mxu0 %v735
      %820 = vmatprep.subr.bf16.mxu0 0
      %821 = vmatpush1.bf16.msra.mxu0 %v734
      %822 = vmatprep.subr.bf16.mxu0 0
      %823 = vmatpush2.bf16.msra.mxu0 %v749
      %824 = vmatprep.subr.bf16.mxu0 0
      %825 = vmatpush2.bf16.msra.mxu0 %v748
      %826 = vmatprep.subr.bf16.mxu0 0
      %827 = vmatpush2.bf16.msra.mxu0 %v747
      %828 = vmatprep.subr.bf16.mxu0 0
      %829 = vmatpush2.bf16.msra.mxu0 %v746
      %830 = vmatprep.subr.bf16.mxu0 0
      %831 = vmatpush2.bf16.msra.mxu0 %v745
      %832 = vmatprep.subr.bf16.mxu0 0
      %833 = vmatpush2.bf16.msra.mxu0 %v744
      %834 = vmatprep.subr.bf16.mxu0 0
      %835 = vmatpush2.bf16.msra.mxu0 %v743
      %836 = vmatprep.subr.bf16.mxu0 0
      %837 = vmatpush2.bf16.msra.mxu0 %v742
      %838 = vmatprep.mubr.bf16.mxu0 %v254
      %839 = vmatmul.mubr.bf16.gmra.mxu0 %v253
      %v840 = vpop.f32.mrf.mxu0
      %v841 = vadd.f32 %v801, %v840
      %v842 = vpop.f32.mrf.mxu0
      %v843 = vpop.f32.mrf.mxu0
      %v844 = vpop.f32.mrf.mxu0
      %845 = vdwg.mxu0
      %v846 = vld [vmem:[%s4] sm:$0xf]
      %v847 = vld [vmem:[%s4 + $0x4] sm:$0xf]
      %v848 = vld [vmem:[%s4 + $0x8] sm:$0xf]
      %v849 = vld [vmem:[%s4 + $0xc] sm:$0xf]
      %v850 = vld [vmem:[%s4 + $0x10] sm:$0xf]
      %v851 = vld [vmem:[%s4 + $0x14] sm:$0xf]
      %v852 = vld [vmem:[%s4 + $0x18] sm:$0xf]
      %v853 = vld [vmem:[%s4 + $0x1c] sm:$0xf]
      %v854 = vld [vmem:[%s4 + $0x20] sm:$0xf]
      %v855 = vld [vmem:[%s4 + $0x24] sm:$0xf]
      %v856 = vld [vmem:[%s4 + $0x28] sm:$0xf]
      %v857 = vld [vmem:[%s4 + $0x2c] sm:$0xf]
      %v858 = vld [vmem:[%s4 + $0x30] sm:$0xf]
      %v859 = vld [vmem:[%s4 + $0x34] sm:$0xf]
      %v860 = vld [vmem:[%s4 + $0x38] sm:$0xf]
      %v861 = vld [vmem:[%s4 + $0x3c] sm:$0xf]
      %v862 = vld [vmem:[%s4 + $0x40] sm:$0xf]
      %v863 = vld [vmem:[%s4 + $0x44] sm:$0xf]
      %v864 = vld [vmem:[%s4 + $0x48] sm:$0xf]
      %v865 = vld [vmem:[%s4 + $0x4c] sm:$0xf]
      %v866 = vld [vmem:[%s4 + $0x50] sm:$0xf]
      %v867 = vld [vmem:[%s4 + $0x54] sm:$0xf]
      %v868 = vld [vmem:[%s4 + $0x58] sm:$0xf]
      %v869 = vld [vmem:[%s4 + $0x5c] sm:$0xf]
      %v870 = vld [vmem:[%s4 + $0x60] sm:$0xf]
      %v871 = vld [vmem:[%s4 + $0x64] sm:$0xf]
      %v872 = vld [vmem:[%s4 + $0x68] sm:$0xf]
      %v873 = vld [vmem:[%s4 + $0x6c] sm:$0xf]
      %v874 = vld [vmem:[%s4 + $0x70] sm:$0xf]
      %v875 = vld [vmem:[%s4 + $0x74] sm:$0xf]
      %v876 = vld [vmem:[%s4 + $0x78] sm:$0xf]
      %v877 = vld [vmem:[%s4 + $0x7c] sm:$0xf]
      %v910 = vunpack.c.l.b16 %v846
      %v911 = vunpack.c.l.b16 %v847
      %v912 = vunpack.c.l.b16 %v848
      %v913 = vunpack.c.l.b16 %v849
      %v914 = vunpack.c.l.b16 %v850
      %v915 = vunpack.c.l.b16 %v851
      %v916 = vunpack.c.l.b16 %v852
      %v917 = vunpack.c.l.b16 %v853
      %v918 = vunpack.c.l.b16 %v854
      %v919 = vunpack.c.l.b16 %v855
      %v920 = vunpack.c.l.b16 %v856
      %v921 = vunpack.c.l.b16 %v857
      %v922 = vunpack.c.l.b16 %v858
      %v923 = vunpack.c.l.b16 %v859
      %v924 = vunpack.c.l.b16 %v860
      %v925 = vunpack.c.l.b16 %v861
      %v926 = vunpack.c.l.b16 %v862
      %v927 = vunpack.c.l.b16 %v863
      %v928 = vunpack.c.l.b16 %v864
      %v929 = vunpack.c.l.b16 %v865
      %v930 = vunpack.c.l.b16 %v866
      %v931 = vunpack.c.l.b16 %v867
      %v932 = vunpack.c.l.b16 %v868
      %v933 = vunpack.c.l.b16 %v869
      %v934 = vunpack.c.l.b16 %v870
      %v935 = vunpack.c.l.b16 %v871
      %v936 = vunpack.c.l.b16 %v872
      %v937 = vunpack.c.l.b16 %v873
      %v938 = vunpack.c.l.b16 %v874
      %v939 = vunpack.c.l.b16 %v875
      %v940 = vunpack.c.l.b16 %v876
      %v941 = vunpack.c.l.b16 %v877
      %v942 = vpack.c.b16 %v911, %v910
      %v943 = vpack.c.b16 %v913, %v912
      %v944 = vpack.c.b16 %v915, %v914
      %v945 = vpack.c.b16 %v917, %v916
      %v946 = vpack.c.b16 %v919, %v918
      %v947 = vpack.c.b16 %v921, %v920
      %v948 = vpack.c.b16 %v923, %v922
      %v949 = vpack.c.b16 %v925, %v924
      %v950 = vpack.c.b16 %v927, %v926
      %v951 = vpack.c.b16 %v929, %v928
      %v952 = vpack.c.b16 %v931, %v930
      %v953 = vpack.c.b16 %v933, %v932
      %v954 = vpack.c.b16 %v935, %v934
      %v955 = vpack.c.b16 %v937, %v936
      %v956 = vpack.c.b16 %v939, %v938
      %v957 = vpack.c.b16 %v941, %v940
      %974 = vmatprep.subr.bf16.mxu0 0
      %975 = vmatpush1.bf16.msra.mxu0 %v949
      %976 = vmatprep.subr.bf16.mxu0 0
      %977 = vmatpush1.bf16.msra.mxu0 %v948
      %978 = vmatprep.subr.bf16.mxu0 0
      %979 = vmatpush1.bf16.msra.mxu0 %v947
      %980 = vmatprep.subr.bf16.mxu0 0
      %981 = vmatpush1.bf16.msra.mxu0 %v946
      %982 = vmatprep.subr.bf16.mxu0 0
      %983 = vmatpush1.bf16.msra.mxu0 %v945
      %984 = vmatprep.subr.bf16.mxu0 0
      %985 = vmatpush1.bf16.msra.mxu0 %v944
      %986 = vmatprep.subr.bf16.mxu0 0
      %987 = vmatpush1.bf16.msra.mxu0 %v943
      %988 = vmatprep.subr.bf16.mxu0 0
      %989 = vmatpush1.bf16.msra.mxu0 %v942
      %990 = vmatprep.subr.bf16.mxu0 0
      %991 = vmatpush2.bf16.msra.mxu0 %v957
      %992 = vmatprep.subr.bf16.mxu0 0
      %993 = vmatpush2.bf16.msra.mxu0 %v956
      %994 = vmatprep.subr.bf16.mxu0 0
      %995 = vmatpush2.bf16.msra.mxu0 %v955
      %996 = vmatprep.subr.bf16.mxu0 0
      %997 = vmatpush2.bf16.msra.mxu0 %v954
      %998 = vmatprep.subr.bf16.mxu0 0
      %999 = vmatpush2.bf16.msra.mxu0 %v953
      %1000 = vmatprep.subr.bf16.mxu0 0
      %1001 = vmatpush2.bf16.msra.mxu0 %v952
      %1002 = vmatprep.subr.bf16.mxu0 0
      %1003 = vmatpush2.bf16.msra.mxu0 %v951
      %1004 = vmatprep.subr.bf16.mxu0 0
      %1005 = vmatpush2.bf16.msra.mxu0 %v950
      %1006 = vmatprep.mubr.bf16.mxu0 %v254
      %1007 = vmatmul.mubr.bf16.gmra.mxu0 %v253
      %v1008 = vpop.f32.mrf.mxu0
      %v1009 = vadd.f32 0.0, %v1008
      %v1010 = vpop.f32.mrf.mxu0
      %v1011 = vpop.f32.mrf.mxu0
      %v1012 = vpop.f32.mrf.mxu0
      %1013 = vdwg.mxu0
      %v1014 = vadd.f32 %v841, %v1009
      %v1015 = vmul.f32 %v669, %v669
      %v1016 = vmul.f32 %v1014, %v1014
      %v1017 = vadd.f32 %v1015, %v1016
      %v1018 = vadd.f32 %v1017, 1e-06
      %v1019 = vrsqrt.pop %v1018
      %v1020 = vmul.f32 %v1018, %v1019
      %vm1021 = vcmp.eq.f32.partialorder %v1018, inf
      %v1022 = vsel %vm1021, %v1018, %v1020
      %vm1023 = vcmp.eq.f32.partialorder %v1018, 0.0
      %v1024 = vand.u32 %v1018, 2147483648
      %v1025 = vsel %vm1023, %v1024, %v1022
      %v1026 = vld [vmem:[%s5] sm:$0xff]
      %v1027 = vld [vmem:[%s5 + $0x8] sm:$0xff]
      %v1028 = vld [vmem:[%s5 + $0x10] sm:$0xff]
      %v1029 = vld [vmem:[%s5 + $0x18] sm:$0xff]
      %v1030 = vld [vmem:[%s5 + $0x20] sm:$0xff]
      %v1031 = vld [vmem:[%s5 + $0x28] sm:$0xff]
      %v1032 = vld [vmem:[%s5 + $0x30] sm:$0xff]
      %v1033 = vld [vmem:[%s5 + $0x38] sm:$0xff]
      %v1034 = vld [vmem:[%s5 + $0x40] sm:$0xff]
      %v1035 = vld [vmem:[%s5 + $0x48] sm:$0xff]
      %v1036 = vld [vmem:[%s5 + $0x50] sm:$0xff]
      %v1037 = vld [vmem:[%s5 + $0x58] sm:$0xff]
      %v1038 = vld [vmem:[%s5 + $0x60] sm:$0xff]
      %v1039 = vld [vmem:[%s5 + $0x68] sm:$0xff]
      %v1040 = vld [vmem:[%s5 + $0x70] sm:$0xff]
      %v1041 = vld [vmem:[%s5 + $0x78] sm:$0xff]
      %1042 = vmatprep.subr.mxu0 0.0
      %1043 = vmatpush1.msra.mxu0 %v1041
      %1044 = vmatprep.subr.mxu0 0.0
      %1045 = vmatpush1.msra.mxu0 %v1040
      %1046 = vmatprep.subr.mxu0 0.0
      %1047 = vmatpush1.msra.mxu0 %v1039
      %1048 = vmatprep.subr.mxu0 0.0
      %1049 = vmatpush1.msra.mxu0 %v1038
      %1050 = vmatprep.subr.mxu0 0.0
      %1051 = vmatpush1.msra.mxu0 %v1037
      %1052 = vmatprep.subr.mxu0 0.0
      %1053 = vmatpush1.msra.mxu0 %v1036
      %1054 = vmatprep.subr.mxu0 0.0
      %1055 = vmatpush1.msra.mxu0 %v1035
      %1056 = vmatprep.subr.mxu0 0.0
      %1057 = vmatpush1.msra.mxu0 %v1034
      %1058 = vmatprep.subr.mxu0 0.0
      %1059 = vmatpush1.msra.mxu0 %v1033
      %1060 = vmatprep.subr.mxu0 0.0
      %1061 = vmatpush1.msra.mxu0 %v1032
      %1062 = vmatprep.subr.mxu0 0.0
      %1063 = vmatpush1.msra.mxu0 %v1031
      %1064 = vmatprep.subr.mxu0 0.0
      %1065 = vmatpush1.msra.mxu0 %v1030
      %1066 = vmatprep.subr.mxu0 0.0
      %1067 = vmatpush1.msra.mxu0 %v1029
      %1068 = vmatprep.subr.mxu0 0.0
      %1069 = vmatpush1.msra.mxu0 %v1028
      %1070 = vmatprep.subr.mxu0 0.0
      %1071 = vmatpush1.msra.mxu0 %v1027
      %1072 = vmatprep.subr.mxu0 0.0
      %1073 = vmatpush1.msra.mxu0 %v1026
      %1074 = vmatprep.subr.mxu0 0.0
      %1075 = vmatpush2.msra.mxu0 0.0
      %1076 = vmatprep.subr.mxu0 0.0
      %1077 = vmatpush2.msra.mxu0 0.0
      %1078 = vmatprep.subr.mxu0 0.0
      %1079 = vmatpush2.msra.mxu0 0.0
      %1080 = vmatprep.subr.mxu0 0.0
      %1081 = vmatpush2.msra.mxu0 0.0
      %1082 = vmatprep.subr.mxu0 0.0
      %1083 = vmatpush2.msra.mxu0 0.0
      %1084 = vmatprep.subr.mxu0 0.0
      %1085 = vmatpush2.msra.mxu0 0.0
      %1086 = vmatprep.subr.mxu0 0.0
      %1087 = vmatpush2.msra.mxu0 0.0
      %1088 = vmatprep.subr.mxu0 0.0
      %1089 = vmatpush2.msra.mxu0 0.0
      %1090 = vmatprep.subr.mxu0 0.0
      %1091 = vmatpush2.msra.mxu0 0.0
      %1092 = vmatprep.subr.mxu0 0.0
      %1093 = vmatpush2.msra.mxu0 0.0
      %1094 = vmatprep.subr.mxu0 0.0
      %1095 = vmatpush2.msra.mxu0 0.0
      %1096 = vmatprep.subr.mxu0 0.0
      %1097 = vmatpush2.msra.mxu0 0.0
      %1098 = vmatprep.subr.mxu0 0.0
      %1099 = vmatpush2.msra.mxu0 0.0
      %1100 = vmatprep.subr.mxu0 0.0
      %1101 = vmatpush2.msra.mxu0 0.0
      %1102 = vmatprep.subr.mxu0 0.0
      %1103 = vmatpush2.msra.mxu0 0.0
      %1104 = vmatprep.subr.mxu0 0.0
      %1105 = vmatpush2.msra.mxu0 0.0
      %1106 = vmatprep.mubr.f32.mxu0 0.0
      %1107 = vmatmul.mubr.f32.gmra.mxu0 %v1025
      %v1108 = vpop.f32.mrf.mxu0
      %v1109 = vadd.f32 0.0, %v1108
      %v1110 = vpop.f32.mrf.mxu0
      %1111 = vdwg.mxu0
      %v1112 = vmax.f32 %v1109, 1e-05
      %v1113 = vlog2.pop %v1112
      %v1114 = vmul.f32 %v1113, 0.6931472
      %1115 = vst [vmem:[%s249] sm:$0xff] %v1114
      %p1116 = scmp.lt.s32.totalorder %s17, 1
      %s1117 = scalar_select %p1116, %s17, 1
      %s1118 = smul.addr %s1117, 8
      %s1119 = scalar_lea.vmem %s6, %s1118
      // Predicated region
      $region45: #{_forward.1} parent=43 // pred_check
        %p1120 = pneg %p166
      $region46: #{_forward.1} parent=43 // pred_check_branch
        %1122 = sbr.rel (%p1120) target = $region48
      $region47: #{_forward.1} parent=43 // pred_region
        _
      $region48: #{_forward.1} parent=43 // pred_fallthru
        _
    $region44: #{_forward.1} parent=5 // pred_fallthru
      _
    %p1123 = scmp.le.s32.totalorder 2, %s12
    // Predicated region
    $region49: #{_forward.1} parent=5 // pred_check
      %p1124 = pneg %p1123
    $region50: #{_forward.1} parent=5 // pred_check_branch
      %1126 = sbr.rel (%p1124) target = $region52
    $region51: #{_forward.1} parent=5 // pred_region
      %s1127 = ssub.s32 %s12, 2
      // Predicated region
      $region53: #{_forward.1} parent=51 // pred_check
        %p1128 = pneg %p172
      $region54: #{_forward.1} parent=51 // pred_check_branch
        %1130 = sbr.rel (%p1128) target = $region56
      $region55: #{_forward.1} parent=51 // pred_region
        %p1131 = scmp.lt.s32.totalorder %s18, 1
        %s1132 = scalar_select %p1131, %s18, 1
        %s1133 = smul.addr %s1132, 8
        %s1134 = scalar_lea.vmem %s6, %s1133
      $region56: #{_forward.1} parent=51 // pred_fallthru
        _
    $region52: #{_forward.1} parent=5 // pred_fallthru
      _
  $region6: #{_forward.1} parent=0 // loop_footer
    %s16 = sadd.s32 1, %s12
  $region7: #{_forward.1} parent=0 // loop_footer_branch
    %11 = sbr.rel target = $region3
  $region8: #{_forward.1} parent=0 // loop_exit
    _

</llo_original>
